<compile_context>
chip_gen: v7x
topology: tpu7x:2x2x1
jax: 0.10.0
libtpu: 0.0.40
codegen_flags: <defaults>
</compile_context>

<pallas_src>
import functools

import jax
import jax.numpy as jnp
from jax.experimental import pallas as pl
from jax.experimental.pallas import tpu as pltpu


# ---------------------------------------------------------------------------
# Kernels (elementwise hot path)
# ---------------------------------------------------------------------------

def _variant_sigmoid_kernel(alpha_ref, x_ref, o_ref):
    # VariantSigmoid: y = 1 / (1 + exp(-alpha * x))
    # Computed as 0.5 * (1 + tanh(alpha * x / 2)) -> one EUP op per element.
    alpha = alpha_ref[0]
    x = x_ref[...].astype(jnp.float32)
    o_ref[...] = (0.5 * (1.0 + jnp.tanh(0.5 * alpha * x))).astype(o_ref.dtype)


def _tanh_kernel(x_ref, o_ref):
    # nn.Tanh
    o_ref[...] = jnp.tanh(x_ref[...].astype(jnp.float32)).astype(o_ref.dtype)


# ---------------------------------------------------------------------------
# Wrapper
# ---------------------------------------------------------------------------

_LANE = 128
_MIN_GRID_STEPS = 8          # keep both v7x TCs fed + fill the DMA pipeline
_LARGE_TENSOR_BYTES = 4 << 20


@functools.lru_cache(maxsize=1)
def _chip_defaults():
    """Per-TPU-generation (block_bytes, vmem_limit_bytes)."""
    # Safe default (fits v7x: 64 MiB physical VMEM, 32 MiB scoped default).
    block_bytes, vmem_limit = 4 << 20, 48 << 20
    try:
        kind = jax.devices()[0].device_kind.lower()
        if "v6" in kind:
            # 128 MiB physical VMEM, ~1.4 TB/s HBM: bigger blocks amortize the
            # ~0.35 us/step grid overhead.
            block_bytes, vmem_limit = 8 << 20, 64 << 20
        elif "v5" in kind:
            # Conservative: v5e scoped VMEM default is 16 MiB, ~0.8 TB/s HBM.
            block_bytes, vmem_limit = 2 << 20, 32 << 20
    except Exception:
        pass
    return block_bytes, vmem_limit


def _sublane_multiple(itemsize):
    # Sub-32-bit dtypes pack along sublanes: 8 rows f32, 16 bf16, 32 int8/fp8.
    return max(8, (32 // itemsize) * 8)


def _run_slab(kernel_fn, slab, smem_scalars, block_bytes, vmem_limit):
    """Run an elementwise kernel over a lane-dense (rows, w) slab."""
    rows, w = slab.shape
    itemsize = jnp.dtype(slab.dtype).itemsize
    sub = _sublane_multiple(itemsize)

    # Row-block size: ~block_bytes per buffer, sublane-aligned.
    br = max(sub, (block_bytes // (w * itemsize) // sub) * sub)

    # Grid-collapse fix: large tensors must produce enough grid steps so that
    # both TensorCores (v7x) get work and the pipeline can overlap DMA/compute.
    total_bytes = rows * w * itemsize
    if total_bytes >= _LARGE_TENSOR_BYTES:
        cap = (pl.cdiv(rows, _MIN_GRID_STEPS) // sub) * sub
        if cap >= sub:
            br = min(br, cap)

    if br >= rows:
        br = rows            # single full-extent block for small tensors
    grid = (pl.cdiv(rows, br),)

    in_specs = [pl.BlockSpec(memory_space=pltpu.MemorySpace.SMEM)
                for _ in smem_scalars]
    in_specs.append(pl.BlockSpec((br, w), lambda i: (i, 0)))

    return pl.pallas_call(
        kernel_fn,
        out_shape=jax.ShapeDtypeStruct((rows, w), slab.dtype),
        grid_spec=pltpu.PrefetchScalarGridSpec(
            num_scalar_prefetch=0,
            grid=grid,
            in_specs=in_specs,
            out_specs=pl.BlockSpec((br, w), lambda i: (i, 0)),
        ),
        compiler_params=pltpu.CompilerParams(
            dimension_semantics=("parallel",),
            vmem_limit_bytes=vmem_limit,
        ),
    )(*smem_scalars, slab)


def _elementwise_pallas(kernel_fn, jnp_fn, x, smem_scalars=()):
    """Apply an elementwise kernel to an arbitrarily-shaped array."""
    orig_shape = x.shape
    n = x.size
    if n == 0:
        return x

    block_bytes, vmem_limit = _chip_defaults()
    itemsize = jnp.dtype(x.dtype).itemsize
    sub = _sublane_multiple(itemsize)
    # Cap the lane width so a single sublane-aligned row block fits the budget.
    max_w = max(_LANE, block_bytes // (sub * itemsize))

    if n % _LANE == 0:
        # Lane-aligned: use the smallest trailing-dim merge whose product is a
        # multiple of 128 -- that reshape keeps the minor-dim layout (no copy).
        w, t = 0, 1
        for d in reversed(orig_shape):
            t *= d
            if t % _LANE == 0:
                w = t
                break
        if not (0 < w <= max_w):
            # Trailing merge too wide: fall back to a fixed lane-dense width
            # (n % 128 == 0 guarantees one of these divides n).
            w = next(c for c in (512, 256, _LANE) if n % c == 0)
        slab = x.reshape(n // w, w)
        out = _run_slab(kernel_fn, slab, smem_scalars, block_bytes, vmem_limit)
        return out.reshape(orig_shape)

    # Not lane-aligned: Pallas on the aligned prefix, plain jnp on the
    # (<128-element) tail.  Avoids the pad + slice full-HBM round trips.
    n_main = (n // _LANE) * _LANE
    flat = x.reshape(-1)
    if n_main == 0:
        return jnp_fn(flat).reshape(orig_shape)   # tiny tensor: let XLA fuse it
    main = _run_slab(kernel_fn, flat[:n_main].reshape(n_main // _LANE, _LANE),
                     smem_scalars, block_bytes, vmem_limit)
    tail = jnp_fn(flat[n_main:])
    return jnp.concatenate([main.reshape(-1), tail]).reshape(orig_shape)


class Activation:
    """JAX/Pallas port of the PyTorch `Activation` module."""

    def __init__(self, act, params=None):
        params = params or {}
        if act == "none":
            self._act = "none"
        elif act == "sigmoid":
            self._act = "sigmoid"
            self._alpha_py = float(params["alpha"])
            # SMEM scalar input -> one compiled kernel serves every alpha.
            self._alpha = jnp.asarray([self._alpha_py], dtype=jnp.float32)
        elif act == "tanh":
            self._act = "tanh"
        else:
            raise KeyError(act)

    def __call__(self, x):
        if self._act == "none":
            # NoneAct is the identity: no kernel, no HBM round trip.
            return x
        if self._act == "sigmoid":
            a = self._alpha_py
            jnp_fn = lambda v: (1.0 / (1.0 + jnp.exp(-a * v))).astype(v.dtype)
            return _elementwise_pallas(_variant_sigmoid_kernel, jnp_fn, x,
                                       (self._alpha,))
        jnp_fn = lambda v: jnp.tanh(v).astype(v.dtype)
        return _elementwise_pallas(_tanh_kernel, jnp_fn, x)


# ---------------------------------------------------------------------------
# Reference (pure JAX) for correctness check
# ---------------------------------------------------------------------------

def _ref(act, params, x):
    if act == "none":
        return x
    if act == "sigmoid":
        return 1.0 / (1.0 + jnp.exp(-params["alpha"] * x))
    if act == "tanh":
        return jnp.tanh(x)
    raise KeyError(act)


if __name__ == "__main__":
    # Small NCHW input consistent with a conv-style network: B=2, C=4, H=W=16.
    x = jax.random.normal(jax.random.PRNGKey(0), (2, 4, 16, 16),
                          dtype=jnp.float32)
    # Also exercise the non-lane-aligned (prefix + jnp tail) path once.
    x_ragged = jax.random.normal(jax.random.PRNGKey(1), (2, 3, 50),
                                 dtype=jnp.float32)

    cases = [
        ("none", {}),
        ("sigmoid", {"alpha": 1.5}),
        ("tanh", {}),
    ]

    ok = True
    for act, params in cases:
        mod = Activation(act, params if params else None)
        for inp in (x, x_ragged):
            y = jax.block_until_ready(mod(inp))
            y_ref = _ref(act, params, inp)
            if y.shape != inp.shape or y.dtype != inp.dtype:
                ok = False
            if not jnp.allclose(y, y_ref, atol=1e-5, rtol=1e-5):
                ok = False

    print("KERNEL_OK" if ok else "KERNEL_MISMATCH")
</pallas_src>

<mosaic_0001>
module attributes {stable_mosaic.version = 11 : i64} {
  func.func @_variant_sigmoid_kernel(%arg0: i32, %arg1: memref<1xf32, #tpu.memory_space<smem>>, %arg2: memref<8x256xf32, #tpu.memory_space<vmem>>, %arg3: memref<8x256xf32, #tpu.memory_space<vmem>>) attributes {dimension_semantics = [#tpu.dimension_semantics<parallel>], iteration_bounds = array<i64: 1>, scalar_prefetch = 0 : i64, scratch_operands = 0 : i64, tpu.core_type = #tpu.core_type<tc>, window_params = [{transform_indices = @transform_0, window_bounds = array<i64: 1>}, {transform_indices = @transform_1, window_bounds = array<i64: 8, 256>}, {transform_indices = @transform_2, window_bounds = array<i64: 8, 256>}]} {
    %c0 = arith.constant 0 : index
    %0 = memref.load %arg1[%c0] : memref<1xf32, #tpu.memory_space<smem>>
    %c0_0 = arith.constant 0 : index
    %c0_1 = arith.constant 0 : index
    %1 = vector.load %arg2[%c0_0, %c0_1] : memref<8x256xf32, #tpu.memory_space<vmem>>, vector<8x256xf32>
    %cst = arith.constant 5.000000e-01 : f32
    %2 = arith.mulf %cst, %0 : f32
    %3 = vector.broadcast %2 : f32 to vector<8x256xf32>
    %4 = arith.mulf %3, %1 : vector<8x256xf32>
    %5 = math.tanh %4 : vector<8x256xf32>
    %cst_2 = arith.constant 1.000000e+00 : f32
    %6 = vector.broadcast %cst_2 : f32 to vector<8x256xf32>
    %7 = arith.addf %6, %5 : vector<8x256xf32>
    %cst_3 = arith.constant 5.000000e-01 : f32
    %8 = vector.broadcast %cst_3 : f32 to vector<8x256xf32>
    %9 = arith.mulf %8, %7 : vector<8x256xf32>
    %c0_4 = arith.constant 0 : index
    %c0_5 = arith.constant 0 : index
    %10 = vector.load %arg3[%c0_4, %c0_5] : memref<8x256xf32, #tpu.memory_space<vmem>>, vector<8x256xf32>
    tpu.vector_store %arg3[%c0_4, %c0_5], %9 {strides = array<i32>} : memref<8x256xf32, #tpu.memory_space<vmem>>, vector<8x256xf32>,
    return
  }
  func.func @transform_0(%arg0: i32) -> i32 {
    %c0_i32 = arith.constant 0 : i32
    %c0_i32_0 = arith.constant 0 : i32
    return %c0_i32 : i32
  }
  func.func @transform_1(%arg0: i32) -> (i32, i32) {
    %c0_i32 = arith.constant 0 : i32
    %c0_i32_0 = arith.constant 0 : i32
    return %arg0, %c0_i32 : i32, i32
  }
  func.func @transform_2(%arg0: i32) -> (i32, i32) {
    %c0_i32 = arith.constant 0 : i32
    %c0_i32_0 = arith.constant 0 : i32
    return %arg0, %c0_i32 : i32, i32
  }
}

</mosaic_0001>

<llo_original>
// kernel: tpu_custom_call.1
$region0: #{tpu_custom_call.1}
  #allocation0 [shape = 'u32[]', space=smem, size = 0x4, offset = 0x4, fixed_abs, tag = 'smem constant byte address 0x4 - core index']
  #allocation1 [shape = 'u32[144,128]{1,0:T(1,128)}', space=vmem, size = 0x12000, scoped, tag = 'internal scratch']
  #allocation2 [shape = 'f32[1]{0:T(128)S(6)}', space=smem, size = 0x200, scoped, tag = 'scoped memory for tpu_custom_call.1']
  %s0 = inlined_call_operand.<no memory space> [shape: f32[1], index: 0, kind: input, shape index: {}]
  %s1 = inlined_call_operand.hbm [shape: f32[8,256], index: 1, kind: input, shape index: {}]
  %s2 = inlined_call_operand.hbm [shape: f32[8,256], index: 2, kind: output, shape index: {}]
  %s3 = sld [smem:[#allocation0]]
  $region22: #{tpu_custom_call.1} parent=0
    _
  %s5 = ssub.s32 1, %s3
  %s6 = scalar_select 0, %s5, %s3
  %7 = sst [smem:[#allocation2]] %s0
  $region1: #{tpu_custom_call.1} parent=0
    #allocation3 [shape = 'u8[8192]{0}', space=vmem, size = 0x2000, scoped, tag = 'input window, operand 1, single buffered']
    #allocation4 [shape = 's32[1]{0}', space=sflag, size = 0x4, scoped, tag = 'scoped memory for tpu_custom_call.1']
    #allocation5 [shape = 's32[1]{0}', space=sflag, size = 0x4, scoped, tag = 'scoped memory for tpu_custom_call.1']
    #allocation6 [shape = 'u8[8192]{0}', space=vmem, size = 0x2000, scoped, tag = 'output window, operand 0, single buffered']
    %8 = vsyncpa [#allocation4], 0
    %9 = vsyncpa [#allocation5], 0
    // Predicated region
    $region2: #{tpu_custom_call.1} parent=1 // pred_check
      _
    $region3: #{tpu_custom_call.1} parent=1 // pred_check_branch
      %11 = sbr.rel (0) target = $region5
    $region4: #{tpu_custom_call.1} parent=1 // pred_region
      _
    $region5: #{tpu_custom_call.1} parent=1 // pred_fallthru
      _
    // Predicated region
    $region6: #{tpu_custom_call.1} parent=1 // pred_check
      _
    $region7: #{tpu_custom_call.1} parent=1 // pred_check_branch
      %13 = sbr.rel (0) target = $region9
    $region8: #{tpu_custom_call.1} parent=1 // pred_region
      %s15 = ssub.s32 256, 256
      %16 = vsyncadd [#allocation4], %s15
      %s18 = sshll.u32 [#allocation3], 4
      %s19 = int_to_ptr.vmem [resolvable:$true] %s18
      %21 = dma.hbm_to_vmem [thread:$0]  %s1, 256, %s19, [#allocation4]
    $region9: #{tpu_custom_call.1} parent=1 // pred_fallthru
      _
    // Predicated region
    $region10: #{tpu_custom_call.1} parent=1 // pred_check
      _
    $region11: #{tpu_custom_call.1} parent=1 // pred_check_branch
      %23 = sbr.rel (0) target = $region13
    $region12: #{tpu_custom_call.1} parent=1 // pred_region
      %24 = dma.done [#allocation4], 256
    $region13: #{tpu_custom_call.1} parent=1 // pred_fallthru
      _
    %s25 = sld [smem:[#allocation2]]
    %v26 = vld [vmem:[#allocation3] sm:$0xff]
    %v27 = vld [vmem:[#allocation3 + $0x8] sm:$0xff]
    %s28 = smul.f32 %s25, 0.5
    %v29 = vstv %s28
    %v30 = vmul.f32 %v29, %v26
    %v31 = vmul.f32 %v29, %v27
    %v32 = vtanh.pop %v30
    %v33 = vtanh.pop %v31
    %v34 = vadd.f32 %v32, 1.0
    %v35 = vadd.f32 %v33, 1.0
    %v36 = vmul.f32 %v34, 0.5
    %v37 = vmul.f32 %v35, 0.5
    %38 = vst [vmem:[#allocation6] sm:$0xff] %v36
    %39 = vst [vmem:[#allocation6 + $0x8] sm:$0xff] %v37
    // Predicated region
    $region14: #{tpu_custom_call.1} parent=1 // pred_check
      _
    $region15: #{tpu_custom_call.1} parent=1 // pred_check_branch
      %41 = sbr.rel (0) target = $region17
    $region16: #{tpu_custom_call.1} parent=1 // pred_region
      %s43 = ssub.s32 256, 256
      %44 = vsyncadd [#allocation5], %s43
      %s46 = sshll.u32 [#allocation6], 4
      %s47 = int_to_ptr.vmem [resolvable:$true] %s46
      %49 = dma.vmem_to_hbm [thread:$0]  %s47, 256, %s2, [#allocation5]
    $region17: #{tpu_custom_call.1} parent=1 // pred_fallthru
      _
    // Predicated region
    $region18: #{tpu_custom_call.1} parent=1 // pred_check
      _
    $region19: #{tpu_custom_call.1} parent=1 // pred_check_branch
      %51 = sbr.rel (0) target = $region21
    $region20: #{tpu_custom_call.1} parent=1 // pred_region
      %52 = dma.done [#allocation5], 256
    $region21: #{tpu_custom_call.1} parent=1 // pred_fallthru
      _
    %53 = vsyncpa [#allocation4], 1
    %54 = vsyncpa [#allocation5], 1

</llo_original>
